<compile_context>
chip_gen: v7x
topology: tpu7x:2x2x1
jax: 0.10.0
libtpu: 0.0.40
codegen_flags: <defaults>
</compile_context>

<pallas_src>
import jax
import jax.numpy as jnp
from jax.experimental import pallas as pl
from jax.experimental.pallas import tpu as pltpu


def _round_up(x, m):
    return ((x + m - 1) // m) * m


def _vmem_capacity_bytes():
    """Physical VMEM of the current chip; conservative 64 MiB fallback (v7x)."""
    try:
        return int(pltpu.get_tpu_info().vmem_capacity_bytes)
    except Exception:
        return 64 * 1024 * 1024


def _largest_divisor_tile(dim, cap):
    """Largest multiple of 128 that divides `dim` (a multiple of 128) and is <= cap."""
    t = min(cap, dim)
    t -= t % 128
    t = max(t, 128)
    while dim % t:
        t -= 128
    return t


# ----------------------------------------------------------------------------
# Kernels
# ----------------------------------------------------------------------------
def _residual_linear_single_kernel(x_ref, w_ref, b_ref, o_ref):
    """Whole (Dp, Dp) weight resident: one MXU pass, bias + residual fused.

    The same x tile feeds the matmul and the residual add (x read once)."""
    x = x_ref[...]
    y = jnp.dot(x, w_ref[...], preferred_element_type=jnp.float32)
    y = y + b_ref[...].astype(jnp.float32) + x.astype(jnp.float32)
    o_ref[...] = y.astype(o_ref.dtype)


def _residual_linear_tiled_kernel(x_mm_ref, w_ref, b_ref, x_res_ref, o_ref, acc_ref):
    """Grid step (i, j, k): out[i, j] = x[i, j] + b[j] + sum_k x[i, k] @ w[k, j]."""
    k = pl.program_id(2)

    @pl.when(k == 0)
    def _init():
        # Fold residual + bias into the accumulator init: both tiles are already
        # resident (their block index does not vary with k), and this removes two
        # (tm, tn) VPU passes from the last-K step's critical path.
        acc_ref[...] = (x_res_ref[...].astype(jnp.float32)
                        + b_ref[...].astype(jnp.float32))

    acc_ref[...] += jnp.dot(x_mm_ref[...], w_ref[...],
                            preferred_element_type=jnp.float32)

    @pl.when(k == pl.num_programs(2) - 1)
    def _finalize():
        o_ref[...] = acc_ref[...].astype(o_ref.dtype)


# ----------------------------------------------------------------------------
# Wrapper
# ----------------------------------------------------------------------------
def residual_add_linear(x, w, b):
    """Computes x @ w + b + x (ResidualAdd with fn = Linear) via Pallas.

    x: (M, D)   w: (D, D)   b: (D,)
    """
    M, D = x.shape
    itemsize = jnp.dtype(x.dtype).itemsize
    sub = 8 if itemsize >= 4 else 16          # sublane multiple for the row dim
    Dp = _round_up(D, 128)                    # lane-dense feature dim

    vmem_cap = _vmem_capacity_bytes()
    big_vmem = vmem_cap >= 100 * 1024 * 1024  # 128-MiB parts (v5e/v6e) vs v7x (64 MiB)
    vmem_limit = (100 if big_vmem else 48) * 1024 * 1024
    budget = int(vmem_limit * 0.85)

    # ---- operand prep: no full padded copy of x ------------------------------
    # Only lane-pad x when D is not a multiple of 128 (rare in production sizes);
    # the padded lanes are zeros, so they contribute 0 to the K reduction.  The
    # M direction is never padded: pl.cdiv grids + masked edge blocks handle it.
    if Dp != D:
        x_in = jnp.zeros((M, Dp), x.dtype).at[:, :D].set(x)
        wp = jnp.zeros((Dp, Dp), w.dtype).at[:D, :D].set(w)   # zero K-rows: invariant
        bp = jnp.zeros((1, Dp), b.dtype).at[0, :D].set(b)
    else:
        x_in = x
        wp = w
        bp = b.reshape(1, D)

    out_shape = jax.ShapeDtypeStruct((M, Dp), x.dtype)

    # ---- single-pass path: whole weight resident in VMEM ---------------------
    def single_pass_bytes(tm):
        return (2 * Dp * Dp * itemsize          # weight (double-buffered alloc)
                + 2 * tm * Dp * itemsize        # x tile (MXU + residual, shared)
                + 2 * tm * Dp * itemsize        # output tile
                + 2 * Dp * itemsize             # bias
                + 2 * tm * Dp * 4)              # f32 intermediates headroom

    tm_single = None
    for cand in (1024, 768, 512, 256, 128, 64, 32, 16, 8):
        tm = min(cand, _round_up(M, sub))
        if single_pass_bytes(tm) <= budget:
            tm_single = tm
            break

    if tm_single is not None:
        tm = tm_single
        out = pl.pallas_call(
            _residual_linear_single_kernel,
            out_shape=out_shape,
            grid_spec=pltpu.PrefetchScalarGridSpec(
                num_scalar_prefetch=0,
                grid=(pl.cdiv(M, tm),),
                in_specs=[
                    pl.BlockSpec((tm, Dp), lambda i: (i, 0)),   # x (MXU + residual)
                    pl.BlockSpec((Dp, Dp), lambda i: (0, 0)),   # weight, DMA'd once
                    pl.BlockSpec((1, Dp), lambda i: (0, 0)),    # bias
                ],
                out_specs=pl.BlockSpec((tm, Dp), lambda i: (i, 0)),
            ),
            compiler_params=pltpu.CompilerParams(
                dimension_semantics=("parallel",),
                vmem_limit_bytes=vmem_limit,
            ),
        )(x_in, wp, bp)
    else:
        # ---- general path: tile over N and K with f32 accumulator ------------
        if big_vmem:
            tm_d, tn_d, tk_d = 1536, 1536, 512    # v5e/v6e: ~100 MiB VMEM budget
        else:
            tm_d, tn_d, tk_d = 1024, 1024, 512    # v7x: stay under 48 MiB
        tm = min(tm_d, _round_up(M, sub))
        tn = _largest_divisor_tile(Dp, tn_d)
        tk = _largest_divisor_tile(Dp, tk_d)

        def tiled_bytes(tm_, tn_, tk_):
            return (2 * tm_ * tk_ * itemsize      # x (MXU stream over K)
                    + 2 * tk_ * tn_ * itemsize    # weight
                    + 2 * tn_ * itemsize          # bias
                    + 2 * tm_ * tn_ * itemsize    # x (residual)
                    + 2 * tm_ * tn_ * itemsize    # output
                    + tm_ * tn_ * 4)              # f32 accumulator scratch

        while tiled_bytes(tm, tn, tk) > budget and tm > 8:
            tm = max(8, (tm // 2) // 8 * 8)
        while tiled_bytes(tm, tn, tk) > budget and tn > 128:
            tn = _largest_divisor_tile(Dp, tn // 2)

        out = pl.pallas_call(
            _residual_linear_tiled_kernel,
            out_shape=out_shape,
            grid_spec=pltpu.PrefetchScalarGridSpec(
                num_scalar_prefetch=0,
                grid=(pl.cdiv(M, tm), Dp // tn, Dp // tk),
                in_specs=[
                    pl.BlockSpec((tm, tk), lambda i, j, k: (i, k)),   # x -> MXU
                    pl.BlockSpec((tk, tn), lambda i, j, k: (k, j)),   # weight
                    pl.BlockSpec((1, tn), lambda i, j, k: (0, j)),    # bias
                    pl.BlockSpec((tm, tn), lambda i, j, k: (i, j)),   # x residual
                ],
                out_specs=pl.BlockSpec((tm, tn), lambda i, j, k: (i, j)),
                scratch_shapes=[pltpu.VMEM((tm, tn), jnp.float32)],
            ),
            compiler_params=pltpu.CompilerParams(
                dimension_semantics=("parallel", "parallel", "arbitrary"),
                vmem_limit_bytes=vmem_limit,
            ),
        )(x_in, wp, bp, x_in)

    if Dp != D:
        out = out[:, :D]
    return out


def _residual_add_forward(x, w, b):
    """ResidualAdd(fn=Linear(D, D)).forward(x) for x of shape (B, S, D)."""
    B, S, D = x.shape
    x2 = x.reshape(B * S, D)
    out = residual_add_linear(x2, w, b)
    return out.reshape(B, S, D)


# jit so the remaining pad/reshape/slice glue fuses with the pallas_call dispatch.
residual_add_forward = jax.jit(_residual_add_forward)


if __name__ == "__main__":
    # Small shapes: batch=2, seq=8, hidden=32
    B, S, D = 2, 8, 32
    key = jax.random.PRNGKey(0)
    kx, kw, kb = jax.random.split(key, 3)

    x = jax.random.normal(kx, (B, S, D), dtype=jnp.float32)
    # Deterministic parameter init for fn = Linear(D, D)
    w = (jax.random.normal(kw, (D, D), dtype=jnp.float32) / jnp.sqrt(D)).astype(jnp.float32)
    b = jax.random.normal(kb, (D,), dtype=jnp.float32) * 0.01

    out = jax.block_until_ready(residual_add_forward(x, w, b))

    # Reference: fn(x) + x  (ResidualAdd semantics)
    ref = jnp.einsum("bsd,de->bse", x, w) + b + x
    assert out.shape == x.shape and out.dtype == x.dtype
    assert jnp.allclose(out, ref, atol=1e-4, rtol=1e-4), "mismatch vs reference"

    print("KERNEL_OK")
</pallas_src>

<mosaic_0001>
module attributes {stable_mosaic.version = 11 : i64} {
  func.func @_residual_linear_single_kernel(%arg0: i32, %arg1: memref<16x128xf32, #tpu.memory_space<vmem>>, %arg2: memref<128x128xf32, #tpu.memory_space<vmem>>, %arg3: memref<1x128xf32, #tpu.memory_space<vmem>>, %arg4: memref<16x128xf32, #tpu.memory_space<vmem>>) attributes {dimension_semantics = [#tpu.dimension_semantics<parallel>], iteration_bounds = array<i64: 1>, scalar_prefetch = 0 : i64, scratch_operands = 0 : i64, tpu.core_type = #tpu.core_type<tc>, window_params = [{transform_indices = @transform_0, window_bounds = array<i64: 16, 128>}, {pipeline_mode = #tpu.pipeline_mode<synchronous>, transform_indices = @transform_1, window_bounds = array<i64: 128, 128>}, {pipeline_mode = #tpu.pipeline_mode<synchronous>, transform_indices = @transform_2, window_bounds = array<i64: 1, 128>}, {transform_indices = @transform_3, window_bounds = array<i64: 16, 128>}]} {
    %c0 = arith.constant 0 : index
    %c0_0 = arith.constant 0 : index
    %0 = vector.load %arg1[%c0, %c0_0] : memref<16x128xf32, #tpu.memory_space<vmem>>, vector<16x128xf32>
    %c0_1 = arith.constant 0 : index
    %c0_2 = arith.constant 0 : index
    %1 = vector.load %arg2[%c0_1, %c0_2] : memref<128x128xf32, #tpu.memory_space<vmem>>, vector<128x128xf32>
    %cst = arith.constant dense<0.000000e+00> : vector<16x128xf32>
    %2 = tpu.matmul %0, %1, %cst {dimension_numbers = #tpu.dot_dimension_numbers<[1], [0], [0], [1], [0, 0, 1, 1], [], []>} : vector<16x128xf32>, vector<128x128xf32>, vector<16x128xf32> -> vector<16x128xf32>
    %c0_3 = arith.constant 0 : index
    %c0_4 = arith.constant 0 : index
    %3 = vector.load %arg3[%c0_3, %c0_4] : memref<1x128xf32, #tpu.memory_space<vmem>>, vector<1x128xf32>
    %4 = vector.broadcast %3 : vector<1x128xf32> to vector<16x128xf32>
    %5 = arith.addf %2, %4 : vector<16x128xf32>
    %6 = arith.addf %5, %0 : vector<16x128xf32>
    %c0_5 = arith.constant 0 : index
    %c0_6 = arith.constant 0 : index
    %7 = vector.load %arg4[%c0_5, %c0_6] : memref<16x128xf32, #tpu.memory_space<vmem>>, vector<16x128xf32>
    tpu.vector_store %arg4[%c0_5, %c0_6], %6 {strides = array<i32>} : memref<16x128xf32, #tpu.memory_space<vmem>>, vector<16x128xf32>,
    return
  }
  func.func @transform_0(%arg0: i32) -> (i32, i32) {
    %c0_i32 = arith.constant 0 : i32
    %c0_i32_0 = arith.constant 0 : i32
    return %arg0, %c0_i32 : i32, i32
  }
  func.func @transform_1(%arg0: i32) -> (i32, i32) {
    %c0_i32 = arith.constant 0 : i32
    %c0_i32_0 = arith.constant 0 : i32
    %c0_i32_1 = arith.constant 0 : i32
    return %c0_i32, %c0_i32_0 : i32, i32
  }
  func.func @transform_2(%arg0: i32) -> (i32, i32) {
    %c0_i32 = arith.constant 0 : i32
    %c0_i32_0 = arith.constant 0 : i32
    %c0_i32_1 = arith.constant 0 : i32
    return %c0_i32, %c0_i32_0 : i32, i32
  }
  func.func @transform_3(%arg0: i32) -> (i32, i32) {
    %c0_i32 = arith.constant 0 : i32
    %c0_i32_0 = arith.constant 0 : i32
    return %arg0, %c0_i32 : i32, i32
  }
}

</mosaic_0001>

<llo_original>
// kernel: _residual_add_forward.1
$region0: #{_residual_add_forward.1}
  #allocation0 [shape = 'u32[]', space=smem, size = 0x4, offset = 0x4, fixed_abs, tag = 'smem constant byte address 0x4 - core index']
  #allocation1 [shape = 'u32[144,128]{1,0:T(1,128)}', space=vmem, size = 0x12000, scoped, tag = 'internal scratch']
  %s0 = inlined_call_operand.vmem [shape: f32[16,128], index: 0, kind: input, shape index: {}]
  %s1 = inlined_call_operand.vmem [shape: f32[128,128], index: 1, kind: input, shape index: {}]
  %s2 = inlined_call_operand.vmem [shape: f32[1,128], index: 2, kind: input, shape index: {}]
  %s3 = inlined_call_operand.vmem [shape: f32[16,128], index: 3, kind: output, shape index: {}]
  %s4 = sld [smem:[#allocation0]]
  $region22: #{_residual_add_forward.1} parent=0
    _
  %s6 = ssub.s32 1, %s4
  %s7 = scalar_select 0, %s6, %s4
  // Predicated region
  $region2: #{_residual_add_forward.1} parent=0 // pred_check
    _
  $region3: #{_residual_add_forward.1} parent=0 // pred_check_branch
    %9 = sbr.rel (0) target = $region5
  $region4: #{_residual_add_forward.1} parent=0 // pred_region
    _
  $region5: #{_residual_add_forward.1} parent=0 // pred_fallthru
    _
  // Predicated region
  $region6: #{_residual_add_forward.1} parent=0 // pred_check
    _
  $region7: #{_residual_add_forward.1} parent=0 // pred_check_branch
    %11 = sbr.rel (0) target = $region9
  $region8: #{_residual_add_forward.1} parent=0 // pred_region
    _
  $region9: #{_residual_add_forward.1} parent=0 // pred_fallthru
    _
  // Predicated region
  $region10: #{_residual_add_forward.1} parent=0 // pred_check
    _
  $region11: #{_residual_add_forward.1} parent=0 // pred_check_branch
    %13 = sbr.rel (0) target = $region13
  $region12: #{_residual_add_forward.1} parent=0 // pred_region
    _
  $region13: #{_residual_add_forward.1} parent=0 // pred_fallthru
    _
  %v14 = vld [vmem:[%s0] sm:$0xff]
  %v15 = vld [vmem:[%s0 + $0x8] sm:$0xff]
  %v16 = vld [vmem:[%s1] sm:$0xff]
  %v17 = vld [vmem:[%s1 + $0x8] sm:$0xff]
  %v18 = vld [vmem:[%s1 + $0x10] sm:$0xff]
  %v19 = vld [vmem:[%s1 + $0x18] sm:$0xff]
  %v20 = vld [vmem:[%s1 + $0x20] sm:$0xff]
  %v21 = vld [vmem:[%s1 + $0x28] sm:$0xff]
  %v22 = vld [vmem:[%s1 + $0x30] sm:$0xff]
  %v23 = vld [vmem:[%s1 + $0x38] sm:$0xff]
  %v24 = vld [vmem:[%s1 + $0x40] sm:$0xff]
  %v25 = vld [vmem:[%s1 + $0x48] sm:$0xff]
  %v26 = vld [vmem:[%s1 + $0x50] sm:$0xff]
  %v27 = vld [vmem:[%s1 + $0x58] sm:$0xff]
  %v28 = vld [vmem:[%s1 + $0x60] sm:$0xff]
  %v29 = vld [vmem:[%s1 + $0x68] sm:$0xff]
  %v30 = vld [vmem:[%s1 + $0x70] sm:$0xff]
  %v31 = vld [vmem:[%s1 + $0x78] sm:$0xff]
  %v32 = vld [vmem:[%s2] sm:$0x1]
  %v34 = vlaneseq
  %v35 = vshrl.u32 %v34, 7
  %v36 = vsub.s32 0, %v35
  %v37 = vrot.slane %v32, %v36
  %39 = vmatprep.subr.mxu0 0.0
  %40 = vmatpush1.msra.mxu0 %v16
  %41 = vmatprep.subr.mxu0 0.0
  %42 = vmatpush1.msra.mxu0 %v17
  %43 = vmatprep.subr.mxu0 0.0
  %44 = vmatpush1.msra.mxu0 %v18
  %45 = vmatprep.subr.mxu0 0.0
  %46 = vmatpush1.msra.mxu0 %v19
  %47 = vmatprep.subr.mxu0 0.0
  %48 = vmatpush1.msra.mxu0 %v20
  %49 = vmatprep.subr.mxu0 0.0
  %50 = vmatpush1.msra.mxu0 %v21
  %51 = vmatprep.subr.mxu0 0.0
  %52 = vmatpush1.msra.mxu0 %v22
  %53 = vmatprep.subr.mxu0 0.0
  %54 = vmatpush1.msra.mxu0 %v23
  %55 = vmatprep.subr.mxu0 0.0
  %56 = vmatpush1.msra.mxu0 %v24
  %57 = vmatprep.subr.mxu0 0.0
  %58 = vmatpush1.msra.mxu0 %v25
  %59 = vmatprep.subr.mxu0 0.0
  %60 = vmatpush1.msra.mxu0 %v26
  %61 = vmatprep.subr.mxu0 0.0
  %62 = vmatpush1.msra.mxu0 %v27
  %63 = vmatprep.subr.mxu0 0.0
  %64 = vmatpush1.msra.mxu0 %v28
  %65 = vmatprep.subr.mxu0 0.0
  %66 = vmatpush1.msra.mxu0 %v29
  %67 = vmatprep.subr.mxu0 0.0
  %68 = vmatpush1.msra.mxu0 %v30
  %69 = vmatprep.subr.mxu0 0.0
  %70 = vmatpush1.msra.mxu0 %v31
  %71 = vmatprep.subr.mxu0 0.0
  %72 = vmatpush1.msra.mxu0 0.0
  %73 = vmatprep.subr.mxu0 0.0
  %74 = vmatpush1.msra.mxu0 0.0
  %75 = vmatprep.subr.mxu0 0.0
  %76 = vmatpush1.msra.mxu0 0.0
  %77 = vmatprep.subr.mxu0 0.0
  %78 = vmatpush1.msra.mxu0 0.0
  %79 = vmatprep.subr.mxu0 0.0
  %80 = vmatpush1.msra.mxu0 0.0
  %81 = vmatprep.subr.mxu0 0.0
  %82 = vmatpush1.msra.mxu0 0.0
  %83 = vmatprep.subr.mxu0 0.0
  %84 = vmatpush1.msra.mxu0 0.0
  %85 = vmatprep.subr.mxu0 0.0
  %86 = vmatpush1.msra.mxu0 0.0
  %87 = vmatprep.subr.mxu0 0.0
  %88 = vmatpush1.msra.mxu0 0.0
  %89 = vmatprep.subr.mxu0 0.0
  %90 = vmatpush1.msra.mxu0 0.0
  %91 = vmatprep.subr.mxu0 0.0
  %92 = vmatpush1.msra.mxu0 0.0
  %93 = vmatprep.subr.mxu0 0.0
  %94 = vmatpush1.msra.mxu0 0.0
  %95 = vmatprep.subr.mxu0 0.0
  %96 = vmatpush1.msra.mxu0 0.0
  %97 = vmatprep.subr.mxu0 0.0
  %98 = vmatpush1.msra.mxu0 0.0
  %99 = vmatprep.subr.mxu0 0.0
  %100 = vmatpush1.msra.mxu0 0.0
  %101 = vmatprep.subr.mxu0 0.0
  %102 = vmatpush1.msra.mxu0 0.0
  %103 = vmatprep.mubr.f32.mxu0 0.0
  %104 = vmatmul.mubr.f32.gmra.mrb[0].mxu0 %v14
  %v105 = vpop.f32.mrb[0].mxu0
  %v106 = vadd.f32 %v37, %v105
  %v107 = vpop.f32.mrb[0].mxu0
  %108 = vmatprep.mubr.f32.mxu0 0.0
  %109 = vmatmul.mubr.f32.gmra.mrb[0].mxu0 %v15
  %v110 = vpop.f32.mrb[0].mxu0
  %v111 = vadd.f32 %v37, %v110
  %v112 = vpop.f32.mrb[0].mxu0
  %113 = vdwg.mxu0
  %v114 = vadd.f32 %v106, %v14
  %v115 = vadd.f32 %v111, %v15
  %116 = vst [vmem:[%s3] sm:$0xff] %v114
  %117 = vst [vmem:[%s3 + $0x8] sm:$0xff] %v115
  // Predicated region
  $region14: #{_residual_add_forward.1} parent=0 // pred_check
    _
  $region15: #{_residual_add_forward.1} parent=0 // pred_check_branch
    %119 = sbr.rel (0) target = $region17
  $region16: #{_residual_add_forward.1} parent=0 // pred_region
    _
  $region17: #{_residual_add_forward.1} parent=0 // pred_fallthru
    _
  // Predicated region
  $region18: #{_residual_add_forward.1} parent=0 // pred_check
    _
  $region19: #{_residual_add_forward.1} parent=0 // pred_check_branch
    %121 = sbr.rel (0) target = $region21
  $region20: #{_residual_add_forward.1} parent=0 // pred_region
    _
  $region21: #{_residual_add_forward.1} parent=0 // pred_fallthru
    _

</llo_original>
